<compile_context>
chip_gen: v6e
topology: v6e:2x2x1
jax: 0.10.0
libtpu: 0.0.40
codegen_flags: <defaults>
</compile_context>

<pallas_src>
import functools

import numpy as np
import jax
import jax.numpy as jnp
from jax.experimental import pallas as pl
from jax.experimental.pallas import tpu as pltpu


# ----------------------------------- Pallas kernel -----------------------------------

def _w_ntxent_kernel(z_ref, lab_rows_ref, lab_cols_ref, out_ref,
                     acc_ref, row_ss_ref, col_ss_ref, *,
                     row_tile, num_row_blocks, temperature, use_cosine, use_bf16):
    bi = pl.program_id(0)                 # row-block index ("parallel")
    k = pl.program_id(1)                  # feature-tile index ("arbitrary")
    last_k = pl.num_programs(1) - 1

    @pl.when(k == 0)
    def _init():
        acc_ref[...] = jnp.zeros_like(acc_ref)
        if use_cosine:
            row_ss_ref[...] = jnp.zeros_like(row_ss_ref)
            col_ss_ref[...] = jnp.zeros_like(col_ss_ref)

    mm_dtype = jnp.bfloat16 if use_bf16 else jnp.float32
    mm_prec = None if use_bf16 else jax.lax.Precision.HIGHEST

    z_raw = z_ref[...]                    # (N, tk) RHS tile, native dtype
    if num_row_blocks == 1:
        zrow_raw = z_raw                  # LHS block == RHS block
    else:
        row_start = pl.multiple_of(bi * row_tile, row_tile)
        zrow_raw = z_ref[pl.ds(row_start, row_tile), :]   # (TM, tk), sliced from VMEM

    z_mm = z_raw.astype(mm_dtype)
    zrow_mm = z_mm if num_row_blocks == 1 else zrow_raw.astype(mm_dtype)

    # Gram row block:  acc[r, c] += z[bi*TM + r, :] . z[c, :]   (MXU, f32 accumulate)
    acc_ref[...] += jax.lax.dot_general(
        zrow_mm, z_mm, (((1,), (1,)), ((), ())),
        preferred_element_type=jnp.float32, precision=mm_prec)

    if use_cosine:
        zf = z_raw.astype(jnp.float32)
        zsq = zf * zf                                                   # (N, tk) f32
        # Column squared norms in lane layout (1, N) via a ones-row matmul (no transpose).
        col_ss_ref[...] += jax.lax.dot_general(
            jnp.ones((1, zsq.shape[1]), jnp.float32), zsq,
            (((1,), (1,)), ((), ())),
            preferred_element_type=jnp.float32, precision=jax.lax.Precision.HIGHEST)
        # Row-block squared norms in sublane layout (TM, 1).
        if num_row_blocks == 1:
            row_ss_ref[...] += jnp.sum(zsq, axis=1, keepdims=True)
        else:
            zrf = zrow_raw.astype(jnp.float32)
            row_ss_ref[...] += jnp.sum(zrf * zrf, axis=1, keepdims=True)

    @pl.when(k == last_k)
    def _finalize():
        G = acc_ref[...]                                  # (TM, N) f32
        tm, n = G.shape
        inv_t = jnp.float32(1.0 / temperature)

        if use_cosine:
            # torch CosineSimilarity clamps |x|*|y| at 1e-8; a per-norm clamp at 1e-8 is
            # equivalent for all non-degenerate inputs.
            inv_r = 1.0 / jnp.sqrt(jnp.maximum(row_ss_ref[...], 1e-16))   # (TM, 1)
            inv_c = 1.0 / jnp.sqrt(jnp.maximum(col_ss_ref[...], 1e-16))   # (1, N)
            zs = (G * (inv_r * inv_t)) * inv_c
        else:
            zs = G * inv_t

        col_id = jax.lax.broadcasted_iota(jnp.int32, (tm, n), 1)
        row_id = jax.lax.broadcasted_iota(jnp.int32, (tm, n), 0) + bi * row_tile
        diag = col_id == row_id

        # Row log-sum-exp over the N-1 off-diagonal columns (diag masked to -inf).
        z_off = jnp.where(diag, -jnp.inf, zs)
        m = jnp.max(z_off, axis=-1, keepdims=True)
        lse = jnp.log(jnp.sum(jnp.exp(z_off - m), axis=-1, keepdims=True)) + m

        # Positive mask: same label, off-diagonal.   -log softmax[i,j] = lse_i - zs[i,j]
        same = lab_rows_ref[...] == lab_cols_ref[...]     # (TM,1) vs (1,N) -> (TM,N)
        posf = jnp.logical_and(same, jnp.logical_not(diag)).astype(jnp.float32)
        npos = jnp.sum(posf, axis=-1, keepdims=True)
        pos_zs = jnp.sum(posf * zs, axis=-1, keepdims=True)
        # NaN/inf for rows whose label is a singleton (npos == 0) -- matches the PyTorch ref.
        row_loss = (lse * npos - pos_zs) / npos           # (TM, 1)

        out_ref[...] = jnp.zeros_like(out_ref) + jnp.sum(row_loss)


# ------------------------------ tile / VMEM selection --------------------------------

def _vmem_capacity_bytes():
    try:
        return int(pltpu.get_tpu_info().vmem_capacity_bytes)
    except Exception:
        return 64 << 20        # conservative default (v7x per-TensorCore VMEM)


def _roundup(x, m):
    return ((x + m - 1) // m) * m


def _estimate_vmem_bytes(N, row_tile, tk, z_bytes):
    pad_s = lambda v: _roundup(max(v, 1), 8)
    pad_l = lambda v: _roundup(max(v, 1), 128)
    acc = pad_s(row_tile) * pad_l(N) * 4                           # Gram accumulator
    z_tile = 2 * pad_s(N) * pad_l(tk) * z_bytes                    # double-buffered z tile
    ss = pad_s(row_tile) * 128 * 4 + 8 * pad_l(N) * 4              # row_ss + col_ss scratch
    labels = 2 * (pad_s(row_tile) * 128 * 4 + 8 * pad_l(N) * 4)    # two label layouts
    out = 2 * 8 * 128 * 4
    return acc + z_tile + ss + labels + out


def _select_tiles(N, D, z_bytes, vmem_cap):
    budget = int(vmem_cap * 0.55)
    # K tile: full D when small / not 128-aligned, else the largest 128-multiple divisor
    # whose double-buffered (N, tk) tile leaves room for the accumulator.
    if D % 128 != 0:
        tk = D   # TODO(synk): zero-pad D to a multiple of 128 for very large irregular D.
    else:
        cands_tk = [D] + [c for c in (2048, 1024, 512, 256, 128) if c < D and D % c == 0]
        tk = next((c for c in cands_tk if 2 * N * c * z_bytes <= budget // 3), 128)
    # Row tile: full N, else the largest multiple-of-8 divisor whose footprint fits.
    cands_tm = [N] + [c for c in (1024, 512, 256, 128, 64, 32, 16, 8) if c < N and N % c == 0]
    row_tile = next((c for c in cands_tm
                     if _estimate_vmem_bytes(N, c, tk, z_bytes) <= budget), cands_tm[-1])
    return row_tile, tk


# ------------------------------------- wrapper ---------------------------------------

def w_ntxent_loss_l_forward(z, label, position=None, *, temperature,
                            use_cosine_similarity, use_bf16_matmul=True):
    """Scalar loss of W_NTXentLoss_l.forward(z, label, position).

    `position` only feeds w_matrix in the PyTorch forward, which is never used in the
    returned loss (dead code), so it is not computed here.
    """
    del position
    N, D = z.shape

    # Small-N regime is HBM-bound on z: ship bf16 over HBM (the kernel keeps f32 norms).
    if use_bf16_matmul and z.dtype == jnp.float32 and N <= 1024:
        z = z.astype(jnp.bfloat16)

    z_bytes = jnp.dtype(z.dtype).itemsize
    vmem_cap = _vmem_capacity_bytes()
    row_tile, tk = _select_tiles(N, D, z_bytes, vmem_cap)
    nb, kt = N // row_tile, D // tk

    est = _estimate_vmem_bytes(N, row_tile, tk, z_bytes)
    vmem_limit = int(min(vmem_cap * 0.92, max(int(est * 1.5) + (8 << 20), 32 << 20)))

    lab = label.reshape(-1).astype(jnp.int32)
    lab_rows = lab.reshape(N, 1)
    lab_cols = lab.reshape(1, N)

    kernel = functools.partial(
        _w_ntxent_kernel,
        row_tile=row_tile, num_row_blocks=nb,
        temperature=float(temperature),
        use_cosine=bool(use_cosine_similarity),
        use_bf16=bool(use_bf16_matmul))

    partials = pl.pallas_call(
        kernel,
        out_shape=jax.ShapeDtypeStruct((nb, 8, 128), jnp.float32),
        grid_spec=pltpu.PrefetchScalarGridSpec(
            num_scalar_prefetch=0,
            grid=(nb, kt),
            in_specs=[
                pl.BlockSpec((N, tk), lambda bi, k: (0, k)),          # z: all rows, K tile
                pl.BlockSpec((row_tile, 1), lambda bi, k: (bi, 0)),   # labels, row block
                pl.BlockSpec((1, N), lambda bi, k: (0, 0)),           # labels, all columns
            ],
            out_specs=pl.BlockSpec((1, 8, 128), lambda bi, k: (bi, 0, 0)),
            scratch_shapes=[
                pltpu.VMEM((row_tile, N), jnp.float32),   # Gram accumulator (f32)
                pltpu.VMEM((row_tile, 1), jnp.float32),   # row squared norms (f32)
                pltpu.VMEM((1, N), jnp.float32),          # column squared norms (f32)
            ]),
        compiler_params=pltpu.CompilerParams(
            dimension_semantics=("parallel", "arbitrary"),
            vmem_limit_bytes=vmem_limit),
    )(z, lab_rows, lab_cols)

    return jnp.sum(partials[:, 0, 0]) / N


# ---------------------------------- NumPy reference ----------------------------------

def _numpy_reference(z, label, temperature, use_cosine):
    z = np.asarray(z, np.float64)
    lab = np.asarray(label)
    N = z.shape[0]
    G = z @ z.T
    if use_cosine:
        norms = np.sqrt(np.diag(G))
        sim = G / np.maximum(norms[:, None] * norms[None, :], 1e-8)
    else:
        sim = G
    off = ~np.eye(N, dtype=bool)
    sim_off = sim[off].reshape(N, N - 1)               # same ordering as torch's bool-index view
    mask_off = (lab[None, :] == lab[:, None])[off].reshape(N, N - 1)
    logits = sim_off / temperature
    logits = logits - logits.max(axis=-1, keepdims=True)
    p = np.exp(logits) / np.exp(logits).sum(axis=-1, keepdims=True)
    nll = -np.log(p)
    row_loss = (nll * mask_off).sum(axis=-1) / mask_off.sum(axis=-1)
    return row_loss.sum() / N


# --------------------------------------- main ---------------------------------------

if __name__ == "__main__":
    N, D = 16, 32
    temperature = 0.5

    key = jax.random.PRNGKey(0)
    kz, kp = jax.random.split(key)
    z = jax.random.normal(kz, (N, D), dtype=jnp.float32)
    position = jax.random.normal(kp, (N, 2), dtype=jnp.float32)   # dead in the forward
    label = jnp.arange(N, dtype=jnp.int32) % 4                    # every class appears 4x

    z_np = np.asarray(z, np.float64)
    z_np_bf16 = np.asarray(z.astype(jnp.bfloat16)).astype(np.float64)

    checks = [
        # (use_cosine, use_bf16_matmul, reference z, rtol, atol)
        (True,  True,  z_np_bf16, 1e-2, 1e-2),   # bf16 MXU fast path, bf16-matched reference
        (False, True,  z_np_bf16, 1e-2, 1e-2),
        (True,  False, z_np,      1e-3, 1e-3),   # f32 MXU path, exact reference
        (False, False, z_np,      1e-3, 1e-3),
    ]
    for use_cos, bf16, zref, rtol, atol in checks:
        loss = w_ntxent_loss_l_forward(
            z, label, position,
            temperature=temperature,
            use_cosine_similarity=use_cos,
            use_bf16_matmul=bf16)
        loss = float(jax.block_until_ready(loss))
        ref = _numpy_reference(zref, np.asarray(label), temperature, use_cos)
        assert np.allclose(loss, ref, rtol=rtol, atol=atol), (use_cos, bf16, loss, ref)

    print("KERNEL_OK")
</pallas_src>

<mosaic_0001>
module attributes {stable_mosaic.version = 11 : i64} {
  func.func @_w_ntxent_kernel(%arg0: i32, %arg1: i32, %arg2: memref<16x32xbf16, #tpu.memory_space<vmem>>, %arg3: memref<16x1xi32, #tpu.memory_space<vmem>>, %arg4: memref<1x16xi32, #tpu.memory_space<vmem>>, %arg5: memref<1x8x128xf32, #tpu.memory_space<vmem>>, %arg6: memref<16x16xf32, #tpu.memory_space<vmem>>, %arg7: memref<16x1xf32, #tpu.memory_space<vmem>>, %arg8: memref<1x16xf32, #tpu.memory_space<vmem>>) attributes {dimension_semantics = [#tpu.dimension_semantics<parallel>, #tpu.dimension_semantics<arbitrary>], iteration_bounds = array<i64: 1, 1>, scalar_prefetch = 0 : i64, scratch_operands = 3 : i64, tpu.core_type = #tpu.core_type<tc>, window_params = [{transform_indices = @transform_0, window_bounds = array<i64: 16, 32>}, {transform_indices = @transform_1, window_bounds = array<i64: 16, 1>}, {pipeline_mode = #tpu.pipeline_mode<synchronous>, transform_indices = @transform_2, window_bounds = array<i64: 1, 16>}, {transform_indices = @transform_3, window_bounds = array<i64: 1, 8, 128>}]} {
    %c0_i32 = arith.constant 0 : i32
    %0 = arith.cmpi eq, %arg1, %c0_i32 : i32
    %1 = arith.extui %0 : i1 to i32
    %c0_i32_0 = arith.constant 0 : i32
    %2 = arith.cmpi ne, %1, %c0_i32_0 : i32
    scf.if %2 {
      %cst_19 = arith.constant 0.000000e+00 : f32
      %23 = vector.broadcast %cst_19 : f32 to vector<16x16xf32>
      %c0_20 = arith.constant 0 : index
      %c0_21 = arith.constant 0 : index
      %24 = vector.load %arg6[%c0_20, %c0_21] : memref<16x16xf32, #tpu.memory_space<vmem>>, vector<16x16xf32>
      tpu.vector_store %arg6[%c0_20, %c0_21], %23 {strides = array<i32>} : memref<16x16xf32, #tpu.memory_space<vmem>>, vector<16x16xf32>,
      %cst_22 = arith.constant 0.000000e+00 : f32
      %25 = vector.broadcast %cst_22 : f32 to vector<16x1xf32>
      %c0_23 = arith.constant 0 : index
      %c0_24 = arith.constant 0 : index
      %26 = vector.load %arg7[%c0_23, %c0_24] : memref<16x1xf32, #tpu.memory_space<vmem>>, vector<16x1xf32>
      tpu.vector_store %arg7[%c0_23, %c0_24], %25 {strides = array<i32>} : memref<16x1xf32, #tpu.memory_space<vmem>>, vector<16x1xf32>,
      %cst_25 = arith.constant 0.000000e+00 : f32
      %27 = vector.broadcast %cst_25 : f32 to vector<1x16xf32>
      %c0_26 = arith.constant 0 : index
      %c0_27 = arith.constant 0 : index
      %28 = vector.load %arg8[%c0_26, %c0_27] : memref<1x16xf32, #tpu.memory_space<vmem>>, vector<1x16xf32>
      tpu.vector_store %arg8[%c0_26, %c0_27], %27 {strides = array<i32>} : memref<1x16xf32, #tpu.memory_space<vmem>>, vector<1x16xf32>,
    } else {
    }
    %c0 = arith.constant 0 : index
    %c0_1 = arith.constant 0 : index
    %3 = vector.load %arg2[%c0, %c0_1] : memref<16x32xbf16, #tpu.memory_space<vmem>>, vector<16x32xbf16>
    %c0_2 = arith.constant 0 : index
    %c0_3 = arith.constant 0 : index
    %4 = vector.load %arg6[%c0_2, %c0_3] : memref<16x16xf32, #tpu.memory_space<vmem>>, vector<16x16xf32>
    %cst = arith.constant dense<0.000000e+00> : vector<16x16xf32>
    %5 = tpu.matmul %3, %3, %cst {dimension_numbers = #tpu.dot_dimension_numbers<[1], [1], [0], [0], [0, 0, 1, 0], [], []>} : vector<16x32xbf16>, vector<16x32xbf16>, vector<16x16xf32> -> vector<16x16xf32>
    %6 = arith.addf %4, %5 : vector<16x16xf32>
    %c0_4 = arith.constant 0 : index
    %c0_5 = arith.constant 0 : index
    %7 = vector.load %arg6[%c0_4, %c0_5] : memref<16x16xf32, #tpu.memory_space<vmem>>, vector<16x16xf32>
    tpu.vector_store %arg6[%c0_4, %c0_5], %6 {strides = array<i32>} : memref<16x16xf32, #tpu.memory_space<vmem>>, vector<16x16xf32>,
    %8 = arith.extf %3 : vector<16x32xbf16> to vector<16x32xf32>
    %9 = arith.mulf %8, %8 : vector<16x32xf32>
    %c0_6 = arith.constant 0 : index
    %c0_7 = arith.constant 0 : index
    %10 = vector.load %arg8[%c0_6, %c0_7] : memref<1x16xf32, #tpu.memory_space<vmem>>, vector<1x16xf32>
    %cst_8 = arith.constant 1.000000e+00 : f32
    %11 = vector.broadcast %cst_8 : f32 to vector<1x32xf32>
    %cst_9 = arith.constant dense<0.000000e+00> : vector<1x16xf32>
    %12 = tpu.matmul %11, %9, %cst_9 {dimension_numbers = #tpu.dot_dimension_numbers<[1], [1], [0], [0], [0, 0, 1, 0], [], []>, precision = #tpu.contract_precision<fp32>} : vector<1x32xf32>, vector<16x32xf32>, vector<1x16xf32> -> vector<1x16xf32>
    %13 = arith.addf %10, %12 : vector<1x16xf32>
    %c0_10 = arith.constant 0 : index
    %c0_11 = arith.constant 0 : index
    %14 = vector.load %arg8[%c0_10, %c0_11] : memref<1x16xf32, #tpu.memory_space<vmem>>, vector<1x16xf32>
    tpu.vector_store %arg8[%c0_10, %c0_11], %13 {strides = array<i32>} : memref<1x16xf32, #tpu.memory_space<vmem>>, vector<1x16xf32>,
    %c0_12 = arith.constant 0 : index
    %c0_13 = arith.constant 0 : index
    %15 = vector.load %arg7[%c0_12, %c0_13] : memref<16x1xf32, #tpu.memory_space<vmem>>, vector<16x1xf32>
    %cst_14 = arith.constant dense<0.000000e+00> : vector<16xf32>
    %16 = vector.multi_reduction <add>, %9, %cst_14 [1] : vector<16x32xf32> to vector<16xf32>
    %17 = vector.shape_cast %16 : vector<16xf32> to vector<16x1xf32>
    %18 = arith.addf %15, %17 : vector<16x1xf32>
    %c0_15 = arith.constant 0 : index
    %c0_16 = arith.constant 0 : index
    %19 = vector.load %arg7[%c0_15, %c0_16] : memref<16x1xf32, #tpu.memory_space<vmem>>, vector<16x1xf32>
    tpu.vector_store %arg7[%c0_15, %c0_16], %18 {strides = array<i32>} : memref<16x1xf32, #tpu.memory_space<vmem>>, vector<16x1xf32>,
    %c0_i32_17 = arith.constant 0 : i32
    %20 = arith.cmpi eq, %arg1, %c0_i32_17 : i32
    %21 = arith.extui %20 : i1 to i32
    %c0_i32_18 = arith.constant 0 : i32
    %22 = arith.cmpi ne, %21, %c0_i32_18 : i32
    scf.if %22 {
      %c0_19 = arith.constant 0 : index
      %c0_20 = arith.constant 0 : index
      %23 = vector.load %arg6[%c0_19, %c0_20] : memref<16x16xf32, #tpu.memory_space<vmem>>, vector<16x16xf32>
      %c0_21 = arith.constant 0 : index
      %c0_22 = arith.constant 0 : index
      %24 = vector.load %arg7[%c0_21, %c0_22] : memref<16x1xf32, #tpu.memory_space<vmem>>, vector<16x1xf32>
      %cst_23 = arith.constant 1.000000e-16 : f32
      %25 = vector.broadcast %cst_23 : f32 to vector<16x1xf32>
      %26 = arith.maximumf %24, %25 : vector<16x1xf32>
      %27 = math.sqrt %26 : vector<16x1xf32>
      %cst_24 = arith.constant 1.000000e+00 : f32
      %28 = vector.broadcast %cst_24 : f32 to vector<16x1xf32>
      %29 = arith.divf %28, %27 : vector<16x1xf32>
      %c0_25 = arith.constant 0 : index
      %c0_26 = arith.constant 0 : index
      %30 = vector.load %arg8[%c0_25, %c0_26] : memref<1x16xf32, #tpu.memory_space<vmem>>, vector<1x16xf32>
      %cst_27 = arith.constant 1.000000e-16 : f32
      %31 = vector.broadcast %cst_27 : f32 to vector<1x16xf32>
      %32 = arith.maximumf %30, %31 : vector<1x16xf32>
      %33 = math.sqrt %32 : vector<1x16xf32>
      %cst_28 = arith.constant 1.000000e+00 : f32
      %34 = vector.broadcast %cst_28 : f32 to vector<1x16xf32>
      %35 = arith.divf %34, %33 : vector<1x16xf32>
      %cst_29 = arith.constant 2.000000e+00 : f32
      %36 = vector.broadcast %cst_29 : f32 to vector<16x1xf32>
      %37 = arith.mulf %29, %36 : vector<16x1xf32>
      %38 = vector.broadcast %37 : vector<16x1xf32> to vector<16x16xf32>
      %39 = arith.mulf %23, %38 : vector<16x16xf32>
      %40 = vector.broadcast %35 : vector<1x16xf32> to vector<16x16xf32>
      %41 = arith.mulf %39, %40 : vector<16x16xf32>
      %42 = tpu.iota {dimensions = array<i32: 1>} : vector<16x16xi32>
      %43 = tpu.iota {dimensions = array<i32: 0>} : vector<16x16xi32>
      %c16_i32 = arith.constant 16 : i32
      %44 = arith.muli %arg0, %c16_i32 : i32
      %45 = vector.broadcast %44 : i32 to vector<16x16xi32>
      %46 = arith.addi %43, %45 : vector<16x16xi32>
      %47 = arith.cmpi eq, %42, %46 : vector<16x16xi32>
      %cst_30 = arith.constant 0xFF800000 : f32
      %48 = vector.broadcast %cst_30 : f32 to vector<16x16xf32>
      %49 = arith.select %47, %48, %41 : vector<16x16xi1>, vector<16x16xf32>
      %cst_31 = arith.constant dense<0xFF800000> : vector<16xf32>
      %50 = vector.multi_reduction <maximumf>, %49, %cst_31 [1] : vector<16x16xf32> to vector<16xf32>
      %51 = vector.shape_cast %50 : vector<16xf32> to vector<16x1xf32>
      %52 = vector.broadcast %51 : vector<16x1xf32> to vector<16x16xf32>
      %53 = arith.subf %49, %52 : vector<16x16xf32>
      %54 = math.exp %53 : vector<16x16xf32>
      %cst_32 = arith.constant dense<0.000000e+00> : vector<16xf32>
      %55 = vector.multi_reduction <add>, %54, %cst_32 [1] : vector<16x16xf32> to vector<16xf32>
      %56 = vector.shape_cast %55 : vector<16xf32> to vector<16x1xf32>
      %57 = math.log %56 : vector<16x1xf32>
      %58 = arith.addf %57, %51 : vector<16x1xf32>
      %c0_33 = arith.constant 0 : index
      %c0_34 = arith.constant 0 : index
      %59 = vector.load %arg3[%c0_33, %c0_34] : memref<16x1xi32, #tpu.memory_space<vmem>>, vector<16x1xi32>
      %c0_35 = arith.constant 0 : index
      %c0_36 = arith.constant 0 : index
      %60 = vector.load %arg4[%c0_35, %c0_36] : memref<1x16xi32, #tpu.memory_space<vmem>>, vector<1x16xi32>
      %61 = vector.broadcast %59 : vector<16x1xi32> to vector<16x16xi32>
      %62 = vector.broadcast %60 : vector<1x16xi32> to vector<16x16xi32>
      %63 = arith.cmpi eq, %61, %62 : vector<16x16xi32>
      %cst_37 = arith.constant dense<true> : vector<16x16xi1>
      %64 = arith.xori %47, %cst_37 : vector<16x16xi1>
      %65 = arith.andi %63, %64 : vector<16x16xi1>
      %66 = arith.extui %65 : vector<16x16xi1> to vector<16x16xi32>
      %67 = arith.sitofp %66 : vector<16x16xi32> to vector<16x16xf32>
      %cst_38 = arith.constant dense<0.000000e+00> : vector<16xf32>
      %68 = vector.multi_reduction <add>, %67, %cst_38 [1] : vector<16x16xf32> to vector<16xf32>
      %69 = vector.shape_cast %68 : vector<16xf32> to vector<16x1xf32>
      %70 = arith.mulf %67, %41 : vector<16x16xf32>
      %cst_39 = arith.constant dense<0.000000e+00> : vector<16xf32>
      %71 = vector.multi_reduction <add>, %70, %cst_39 [1] : vector<16x16xf32> to vector<16xf32>
      %72 = vector.shape_cast %71 : vector<16xf32> to vector<16x1xf32>
      %73 = arith.mulf %58, %69 : vector<16x1xf32>
      %74 = arith.subf %73, %72 : vector<16x1xf32>
      %75 = arith.divf %74, %69 : vector<16x1xf32>
      %cst_40 = arith.constant 0.000000e+00 : f32
      %76 = vector.broadcast %cst_40 : f32 to vector<1x8x128xf32>
      %77 = vector.shape_cast %75 : vector<16x1xf32> to vector<1x16x1xf32>
      %cst_41 = arith.constant dense<0.000000e+00> : vector<1xf32>
      %78 = vector.multi_reduction <add>, %77, %cst_41 [1, 2] : vector<1x16x1xf32> to vector<1xf32>
      %79 = vector.shape_cast %78 : vector<1xf32> to vector<1x1x1xf32>
      %80 = vector.extract %79[0, 0, 0] : f32 from vector<1x1x1xf32>
      %81 = vector.broadcast %80 : f32 to vector<1x8x128xf32>
      %82 = arith.addf %76, %81 : vector<1x8x128xf32>
      %c0_42 = arith.constant 0 : index
      %c0_43 = arith.constant 0 : index
      %c0_44 = arith.constant 0 : index
      %83 = vector.load %arg5[%c0_42, %c0_43, %c0_44] : memref<1x8x128xf32, #tpu.memory_space<vmem>>, vector<1x8x128xf32>
      tpu.vector_store %arg5[%c0_42, %c0_43, %c0_44], %82 {strides = array<i32>} : memref<1x8x128xf32, #tpu.memory_space<vmem>>, vector<1x8x128xf32>,
    } else {
    }
    return
  }
  func.func @transform_0(%arg0: i32, %arg1: i32) -> (i32, i32) {
    %c0_i32 = arith.constant 0 : i32
    %c0_i32_0 = arith.constant 0 : i32
    return %c0_i32, %arg1 : i32, i32
  }
  func.func @transform_1(%arg0: i32, %arg1: i32) -> (i32, i32) {
    %c0_i32 = arith.constant 0 : i32
    %c0_i32_0 = arith.constant 0 : i32
    return %arg0, %c0_i32 : i32, i32
  }
  func.func @transform_2(%arg0: i32, %arg1: i32) -> (i32, i32) {
    %c0_i32 = arith.constant 0 : i32
    %c0_i32_0 = arith.constant 0 : i32
    %c0_i32_1 = arith.constant 0 : i32
    return %c0_i32, %c0_i32_0 : i32, i32
  }
  func.func @transform_3(%arg0: i32, %arg1: i32) -> (i32, i32, i32) {
    %c0_i32 = arith.constant 0 : i32
    %c0_i32_0 = arith.constant 0 : i32
    %c0_i32_1 = arith.constant 0 : i32
    return %arg0, %c0_i32, %c0_i32_0 : i32, i32, i32
  }
}

</mosaic_0001>

<llo_original>
// kernel: tpu_custom_call.1
$region0: #{tpu_custom_call.1}
  #allocation0 [shape = 'u32[]', space=smem, size = 0x4, offset = 0x4, fixed_abs, tag = 'smem constant byte address 0x4 - core index']
  #allocation1 [shape = 'u32[144,128]{1,0:T(1,128)}', space=vmem, size = 0x12000, scoped, tag = 'internal scratch']
  #allocation2 [shape = 'f32[16,16]{1,0:T(8,128)}', space=vmem, size = 0x2000, scoped, tag = 'scratch operand']
  #allocation3 [shape = 'f32[16,1]{1,0:T(8,128)}', space=vmem, size = 0x2000, scoped, tag = 'scratch operand']
  #allocation4 [shape = 'f32[1,16]{1,0:T(1,128)}', space=vmem, size = 0x200, scoped, tag = 'scratch operand']
  %s0 = inlined_call_operand.vmem [shape: bf16[16,32], index: 0, kind: input, shape index: {}]
  %s1 = inlined_call_operand.vmem [shape: s32[16,1], index: 1, kind: input, shape index: {}]
  %s2 = inlined_call_operand.vmem [shape: s32[1,16], index: 2, kind: input, shape index: {}]
  %s3 = inlined_call_operand.hbm [shape: f32[1,8,128], index: 3, kind: output, shape index: {}]
  %s4 = sld [smem:[#allocation0]]
  $region30: #{tpu_custom_call.1} parent=0
    _
  %s6 = ssub.s32 1, %s4
  %s7 = scalar_select 0, %s6, %s4
  $region1: #{tpu_custom_call.1} parent=0
    #allocation5 [shape = 'u8[4096]{0}', space=vmem, size = 0x1000, scoped, tag = 'output window, operand 0, single buffered']
    #allocation6 [shape = 's32[1]{0}', space=sflag, size = 0x4, scoped, tag = 'scoped memory for tpu_custom_call.1']
    %8 = vsyncpa [#allocation6], 0
    // Predicated region
    $region2: #{tpu_custom_call.1} parent=1 // pred_check
      _
    $region3: #{tpu_custom_call.1} parent=1 // pred_check_branch
      %10 = sbr.rel (0) target = $region5
    $region4: #{tpu_custom_call.1} parent=1 // pred_region
      _
    $region5: #{tpu_custom_call.1} parent=1 // pred_fallthru
      _
    // Predicated region
    $region6: #{tpu_custom_call.1} parent=1 // pred_check
      _
    $region7: #{tpu_custom_call.1} parent=1 // pred_check_branch
      %12 = sbr.rel (0) target = $region9
    $region8: #{tpu_custom_call.1} parent=1 // pred_region
      _
    $region9: #{tpu_custom_call.1} parent=1 // pred_fallthru
      _
    // Predicated region
    $region10: #{tpu_custom_call.1} parent=1 // pred_check
      _
    $region11: #{tpu_custom_call.1} parent=1 // pred_check_branch
      %14 = sbr.rel (0) target = $region13
    $region12: #{tpu_custom_call.1} parent=1 // pred_region
      _
    $region13: #{tpu_custom_call.1} parent=1 // pred_fallthru
      _
    %p16 = scmp.eq.s32.totalorder 0, 0
    // Predicated region
    $region14: #{tpu_custom_call.1} parent=1 // pred_check
      %p17 = pneg %p16
    $region15: #{tpu_custom_call.1} parent=1 // pred_check_branch
      %19 = sbr.rel (%p17) target = $region17
    $region16: #{tpu_custom_call.1} parent=1 // pred_region
      %vm20 = vcmask 130048
      %21 = vst.msk [vmem:[#allocation2] sm:$0xff] %vm20, 0.0
      %22 = vst.msk [vmem:[#allocation2 + $0x8] sm:$0xff] %vm20, 0.0
      %vm23 = vcmask 7168
      %24 = vst.msk [vmem:[#allocation3] sm:$0xff] %vm23, 0.0
      %25 = vst.msk [vmem:[#allocation3 + $0x8] sm:$0xff] %vm23, 0.0
      %vm26 = vcmask 122880
      %27 = vst.msk [vmem:[#allocation4] sm:$0x1] %vm26, 0.0
    $region17: #{tpu_custom_call.1} parent=1 // pred_fallthru
      _
    %v28 = vld [vmem:[%s0] sm:$0xf]
    %v29 = vld [vmem:[%s0 + $0x4] sm:$0xf]
    %v30 = vld [vmem:[#allocation2] sm:$0xff]
    %v31 = vld [vmem:[#allocation2 + $0x8] sm:$0xff]
    %v34 = vunpack.c.l.b16 %v28
    %v35 = vunpack.c.l.b16 %v29
    %v36 = vpack.c.b16 %v35, %v34
    %vm37 = vcmask 261120
    %v39 = vsel %vm37, %v36, 0
    %41 = vmatprep.subr.bf16.mxu0 0
    %42 = vmatpush1.bf16.xpose.msra.mxu0 0
    %43 = vmatprep.subr.bf16.mxu0 0
    %44 = vmatpush1.bf16.xpose.msra.mxu0 0
    %45 = vmatprep.subr.bf16.mxu0 0
    %46 = vmatpush1.bf16.xpose.msra.mxu0 0
    %47 = vmatprep.subr.bf16.mxu0 0
    %48 = vmatpush1.bf16.xpose.msra.mxu0 0
    %49 = vmatprep.subr.bf16.mxu0 0
    %50 = vmatpush1.bf16.xpose.msra.mxu0 0
    %51 = vmatprep.subr.bf16.mxu0 0
    %52 = vmatpush1.bf16.xpose.msra.mxu0 0
    %53 = vmatprep.subr.bf16.mxu0 0
    %54 = vmatpush1.bf16.xpose.msra.mxu0 0
    %55 = vmatprep.subr.bf16.mxu0 0
    %56 = vmatpush1.bf16.xpose.msra.mxu0 %v39
    %57 = vmatprep.subr.bf16.mxu0 0
    %58 = vmatpush2.bf16.xpose.msra.mxu0 0
    %59 = vmatprep.subr.bf16.mxu0 0
    %60 = vmatpush2.bf16.xpose.msra.mxu0 0
    %61 = vmatprep.subr.bf16.mxu0 0
    %62 = vmatpush2.bf16.xpose.msra.mxu0 0
    %63 = vmatprep.subr.bf16.mxu0 0
    %64 = vmatpush2.bf16.xpose.msra.mxu0 0
    %65 = vmatprep.subr.bf16.mxu0 0
    %66 = vmatpush2.bf16.xpose.msra.mxu0 0
    %67 = vmatprep.subr.bf16.mxu0 0
    %68 = vmatpush2.bf16.xpose.msra.mxu0 0
    %69 = vmatprep.subr.bf16.mxu0 0
    %70 = vmatpush2.bf16.xpose.msra.mxu0 0
    %71 = vmatprep.subr.bf16.mxu0 0
    %72 = vmatpush2.bf16.xpose.msra.mxu0 0
    %73 = vmatprep.mubr.bf16.mxu0 0
    %74 = vmatmul.mubr.bf16.gmra.mxu0 %v39
    %v75 = vpop.f32.mrf.mxu0
    %v76 = vadd.f32 0.0, %v75
    %v77 = vpop.f32.mrf.mxu0
    %v78 = vpop.f32.mrf.mxu0
    %v79 = vadd.f32 0.0, %v78
    %v80 = vpop.f32.mrf.mxu0
    %81 = vdwg.mxu0
    %v82 = vadd.f32 %v30, %v76
    %v83 = vadd.f32 %v31, %v79
    %vm84 = vcmask 130048
    %85 = vst.msk [vmem:[#allocation2] sm:$0xff] %vm84, %v82
    %86 = vst.msk [vmem:[#allocation2 + $0x8] sm:$0xff] %vm84, %v83
    %v87 = vunpack.c.l.bf16 %v28
    %v88 = vunpack.c.l.bf16 %v29
    %v89 = vmul.f32 %v87, %v87
    %v90 = vmul.f32 %v88, %v88
    %v91 = vld [vmem:[#allocation4] sm:$0x1]
    %v93 = vsel %vm37, 1.0, 0
    %v96 = vsel %vm37, %v89, 0
    %v99 = vsel %vm37, %v90, 0
    %101 = vmatprep.subr.mxu0 0.0
    %102 = vmatpush1.xpose.msra.mxu0 0.0
    %103 = vmatprep.subr.mxu0 0.0
    %104 = vmatpush1.xpose.msra.mxu0 0.0
    %105 = vmatprep.subr.mxu0 0.0
    %106 = vmatpush1.xpose.msra.mxu0 0.0
    %107 = vmatprep.subr.mxu0 0.0
    %108 = vmatpush1.xpose.msra.mxu0 0.0
    %109 = vmatprep.subr.mxu0 0.0
    %110 = vmatpush1.xpose.msra.mxu0 0.0
    %111 = vmatprep.subr.mxu0 0.0
    %112 = vmatpush1.xpose.msra.mxu0 0.0
    %113 = vmatprep.subr.mxu0 0.0
    %114 = vmatpush1.xpose.msra.mxu0 0.0
    %115 = vmatprep.subr.mxu0 0.0
    %116 = vmatpush1.xpose.msra.mxu0 0.0
    %117 = vmatprep.subr.mxu0 0.0
    %118 = vmatpush1.xpose.msra.mxu0 0.0
    %119 = vmatprep.subr.mxu0 0.0
    %120 = vmatpush1.xpose.msra.mxu0 0.0
    %121 = vmatprep.subr.mxu0 0.0
    %122 = vmatpush1.xpose.msra.mxu0 0.0
    %123 = vmatprep.subr.mxu0 0.0
    %124 = vmatpush1.xpose.msra.mxu0 0.0
    %125 = vmatprep.subr.mxu0 0.0
    %126 = vmatpush1.xpose.msra.mxu0 0.0
    %127 = vmatprep.subr.mxu0 0.0
    %128 = vmatpush1.xpose.msra.mxu0 0.0
    %129 = vmatprep.subr.mxu0 0.0
    %v130 = vand.u32 %v99, 4294901760
    %131 = vmatpush1.xpose.msra.mxu0 %v130
    %132 = vmatprep.subr.mxu0 0.0
    %v133 = vand.u32 %v96, 4294901760
    %134 = vmatpush1.xpose.msra.mxu0 %v133
    %135 = vmatprep.subr.mxu0 0.0
    %136 = vmatpush2.xpose.msra.mxu0 0.0
    %137 = vmatprep.subr.mxu0 0.0
    %138 = vmatpush2.xpose.msra.mxu0 0.0
    %139 = vmatprep.subr.mxu0 0.0
    %140 = vmatpush2.xpose.msra.mxu0 0.0
    %141 = vmatprep.subr.mxu0 0.0
    %142 = vmatpush2.xpose.msra.mxu0 0.0
    %143 = vmatprep.subr.mxu0 0.0
    %144 = vmatpush2.xpose.msra.mxu0 0.0
    %145 = vmatprep.subr.mxu0 0.0
    %146 = vmatpush2.xpose.msra.mxu0 0.0
    %147 = vmatprep.subr.mxu0 0.0
    %148 = vmatpush2.xpose.msra.mxu0 0.0
    %149 = vmatprep.subr.mxu0 0.0
    %150 = vmatpush2.xpose.msra.mxu0 0.0
    %151 = vmatprep.subr.mxu0 0.0
    %152 = vmatpush2.xpose.msra.mxu0 0.0
    %153 = vmatprep.subr.mxu0 0.0
    %154 = vmatpush2.xpose.msra.mxu0 0.0
    %155 = vmatprep.subr.mxu0 0.0
    %156 = vmatpush2.xpose.msra.mxu0 0.0
    %157 = vmatprep.subr.mxu0 0.0
    %158 = vmatpush2.xpose.msra.mxu0 0.0
    %159 = vmatprep.subr.mxu0 0.0
    %160 = vmatpush2.xpose.msra.mxu0 0.0
    %161 = vmatprep.subr.mxu0 0.0
    %162 = vmatpush2.xpose.msra.mxu0 0.0
    %163 = vmatprep.subr.mxu0 0.0
    %164 = vmatpush2.xpose.msra.mxu0 0.0
    %165 = vmatprep.subr.mxu0 0.0
    %166 = vmatpush2.xpose.msra.mxu0 0.0
    %167 = vmatprep.mubr.f32.mxu0 0.0
    %v168 = vand.u32 %v93, 4294901760
    %v169 = vsub.f32 %v93, %v168
    %v170 = vand.u32 %v169, 4294901760
    %v171 = vsub.f32 %v169, %v170
    %v172 = vand.u32 %v171, 4294901760
    %173 = vmatmul.mubr.f32.gmra.mxu0 %v172
    %v174 = vpop.f32.mrf.mxu0
    %v175 = vadd.f32 0.0, %v174
    %v176 = vpop.f32.mrf.mxu0
    %177 = vdwg.mxu0
    %178 = vmatprep.subr.mxu0 0.0
    %179 = vmatpush1.xpose.msra.mxu0 0.0
    %180 = vmatprep.subr.mxu0 0.0
    %181 = vmatpush1.xpose.msra.mxu0 0.0
    %182 = vmatprep.subr.mxu0 0.0
    %183 = vmatpush1.xpose.msra.mxu0 0.0
    %184 = vmatprep.subr.mxu0 0.0
    %185 = vmatpush1.xpose.msra.mxu0 0.0
    %186 = vmatprep.subr.mxu0 0.0
    %187 = vmatpush1.xpose.msra.mxu0 0.0
    %188 = vmatprep.subr.mxu0 0.0
    %189 = vmatpush1.xpose.msra.mxu0 0.0
    %190 = vmatprep.subr.mxu0 0.0
    %191 = vmatpush1.xpose.msra.mxu0 0.0
    %192 = vmatprep.subr.mxu0 0.0
    %193 = vmatpush1.xpose.msra.mxu0 0.0
    %194 = vmatprep.subr.mxu0 0.0
    %195 = vmatpush1.xpose.msra.mxu0 0.0
    %196 = vmatprep.subr.mxu0 0.0
    %197 = vmatpush1.xpose.msra.mxu0 0.0
    %198 = vmatprep.subr.mxu0 0.0
    %199 = vmatpush1.xpose.msra.mxu0 0.0
    %200 = vmatprep.subr.mxu0 0.0
    %201 = vmatpush1.xpose.msra.mxu0 0.0
    %202 = vmatprep.subr.mxu0 0.0
    %203 = vmatpush1.xpose.msra.mxu0 0.0
    %204 = vmatprep.subr.mxu0 0.0
    %205 = vmatpush1.xpose.msra.mxu0 0.0
    %206 = vmatprep.subr.mxu0 0.0
    %v207 = vand.u32 %v99, 4294901760
    %v208 = vsub.f32 %v99, %v207
    %v209 = vand.u32 %v208, 4294901760
    %v210 = vsub.f32 %v208, %v209
    %v211 = vand.u32 %v210, 4294901760
    %212 = vmatpush1.xpose.msra.mxu0 %v211
    %213 = vmatprep.subr.mxu0 0.0
    %v214 = vand.u32 %v96, 4294901760
    %v215 = vsub.f32 %v96, %v214
    %v216 = vand.u32 %v215, 4294901760
    %v217 = vsub.f32 %v215, %v216
    %v218 = vand.u32 %v217, 4294901760
    %219 = vmatpush1.xpose.msra.mxu0 %v218
    %220 = vmatprep.subr.mxu0 0.0
    %221 = vmatpush2.xpose.msra.mxu0 0.0
    %222 = vmatprep.subr.mxu0 0.0
    %223 = vmatpush2.xpose.msra.mxu0 0.0
    %224 = vmatprep.subr.mxu0 0.0
    %225 = vmatpush2.xpose.msra.mxu0 0.0
    %226 = vmatprep.subr.mxu0 0.0
    %227 = vmatpush2.xpose.msra.mxu0 0.0
    %228 = vmatprep.subr.mxu0 0.0
    %229 = vmatpush2.xpose.msra.mxu0 0.0
    %230 = vmatprep.subr.mxu0 0.0
    %231 = vmatpush2.xpose.msra.mxu0 0.0
    %232 = vmatprep.subr.mxu0 0.0
    %233 = vmatpush2.xpose.msra.mxu0 0.0
    %234 = vmatprep.subr.mxu0 0.0
    %235 = vmatpush2.xpose.msra.mxu0 0.0
    %236 = vmatprep.subr.mxu0 0.0
    %237 = vmatpush2.xpose.msra.mxu0 0.0
    %238 = vmatprep.subr.mxu0 0.0
    %239 = vmatpush2.xpose.msra.mxu0 0.0
    %240 = vmatprep.subr.mxu0 0.0
    %241 = vmatpush2.xpose.msra.mxu0 0.0
    %242 = vmatprep.subr.mxu0 0.0
    %243 = vmatpush2.xpose.msra.mxu0 0.0
    %244 = vmatprep.subr.mxu0 0.0
    %245 = vmatpush2.xpose.msra.mxu0 0.0
    %246 = vmatprep.subr.mxu0 0.0
    %247 = vmatpush2.xpose.msra.mxu0 0.0
    %248 = vmatprep.subr.mxu0 0.0
    %249 = vmatpush2.xpose.msra.mxu0 0.0
    %250 = vmatprep.subr.mxu0 0.0
    %251 = vmatpush2.xpose.msra.mxu0 0.0
    %252 = vmatprep.mubr.f32.mxu0 0.0
    %v253 = vand.u32 %v93, 4294901760
    %254 = vmatmul.mubr.f32.gmra.mxu0 %v253
    %v255 = vpop.f32.mrf.mxu0
    %v256 = vadd.f32 %v175, %v255
    %v257 = vpop.f32.mrf.mxu0
    %258 = vdwg.mxu0
    %259 = vmatprep.subr.mxu0 0.0
    %260 = vmatpush1.xpose.msra.mxu0 0.0
    %261 = vmatprep.subr.mxu0 0.0
    %262 = vmatpush1.xpose.msra.mxu0 0.0
    %263 = vmatprep.subr.mxu0 0.0
    %264 = vmatpush1.xpose.msra.mxu0 0.0
    %265 = vmatprep.subr.mxu0 0.0
    %266 = vmatpush1.xpose.msra.mxu0 0.0
    %267 = vmatprep.subr.mxu0 0.0
    %268 = vmatpush1.xpose.msra.mxu0 0.0
    %269 = vmatprep.subr.mxu0 0.0
    %270 = vmatpush1.xpose.msra.mxu0 0.0
    %271 = vmatprep.subr.mxu0 0.0
    %272 = vmatpush1.xpose.msra.mxu0 0.0
    %273 = vmatprep.subr.mxu0 0.0
    %274 = vmatpush1.xpose.msra.mxu0 0.0
    %275 = vmatprep.subr.mxu0 0.0
    %276 = vmatpush1.xpose.msra.mxu0 0.0
    %277 = vmatprep.subr.mxu0 0.0
    %278 = vmatpush1.xpose.msra.mxu0 0.0
    %279 = vmatprep.subr.mxu0 0.0
    %280 = vmatpush1.xpose.msra.mxu0 0.0
    %281 = vmatprep.subr.mxu0 0.0
    %282 = vmatpush1.xpose.msra.mxu0 0.0
    %283 = vmatprep.subr.mxu0 0.0
    %284 = vmatpush1.xpose.msra.mxu0 0.0
    %285 = vmatprep.subr.mxu0 0.0
    %286 = vmatpush1.xpose.msra.mxu0 0.0
    %287 = vmatprep.subr.mxu0 0.0
    %v288 = vand.u32 %v99, 4294901760
    %v289 = vsub.f32 %v99, %v288
    %290 = vmatpush1.xpose.msra.mxu0 %v289
    %291 = vmatprep.subr.mxu0 0.0
    %v292 = vand.u32 %v96, 4294901760
    %v293 = vsub.f32 %v96, %v292
    %294 = vmatpush1.xpose.msra.mxu0 %v293
    %295 = vmatprep.subr.mxu0 0.0
    %296 = vmatpush2.xpose.msra.mxu0 0.0
    %297 = vmatprep.subr.mxu0 0.0
    %298 = vmatpush2.xpose.msra.mxu0 0.0
    %299 = vmatprep.subr.mxu0 0.0
    %300 = vmatpush2.xpose.msra.mxu0 0.0
    %301 = vmatprep.subr.mxu0 0.0
    %302 = vmatpush2.xpose.msra.mxu0 0.0
    %303 = vmatprep.subr.mxu0 0.0
    %304 = vmatpush2.xpose.msra.mxu0 0.0
    %305 = vmatprep.subr.mxu0 0.0
    %306 = vmatpush2.xpose.msra.mxu0 0.0
    %307 = vmatprep.subr.mxu0 0.0
    %308 = vmatpush2.xpose.msra.mxu0 0.0
    %309 = vmatprep.subr.mxu0 0.0
    %310 = vmatpush2.xpose.msra.mxu0 0.0
    %311 = vmatprep.subr.mxu0 0.0
    %312 = vmatpush2.xpose.msra.mxu0 0.0
    %313 = vmatprep.subr.mxu0 0.0
    %314 = vmatpush2.xpose.msra.mxu0 0.0
    %315 = vmatprep.subr.mxu0 0.0
    %316 = vmatpush2.xpose.msra.mxu0 0.0
    %317 = vmatprep.subr.mxu0 0.0
    %318 = vmatpush2.xpose.msra.mxu0 0.0
    %319 = vmatprep.subr.mxu0 0.0
    %320 = vmatpush2.xpose.msra.mxu0 0.0
    %321 = vmatprep.subr.mxu0 0.0
    %322 = vmatpush2.xpose.msra.mxu0 0.0
    %323 = vmatprep.subr.mxu0 0.0
    %324 = vmatpush2.xpose.msra.mxu0 0.0
    %325 = vmatprep.subr.mxu0 0.0
    %326 = vmatpush2.xpose.msra.mxu0 0.0
    %327 = vmatprep.mubr.f32.mxu0 0.0
    %v328 = vand.u32 %v93, 4294901760
    %v329 = vsub.f32 %v93, %v328
    %330 = vmatmul.mubr.f32.gmra.mxu0 %v329
    %v331 = vpop.f32.mrf.mxu0
    %v332 = vadd.f32 %v256, %v331
    %v333 = vpop.f32.mrf.mxu0
    %334 = vdwg.mxu0
    %335 = vmatprep.subr.mxu0 0.0
    %336 = vmatpush1.xpose.msra.mxu0 0.0
    %337 = vmatprep.subr.mxu0 0.0
    %338 = vmatpush1.xpose.msra.mxu0 0.0
    %339 = vmatprep.subr.mxu0 0.0
    %340 = vmatpush1.xpose.msra.mxu0 0.0
    %341 = vmatprep.subr.mxu0 0.0
    %342 = vmatpush1.xpose.msra.mxu0 0.0
    %343 = vmatprep.subr.mxu0 0.0
    %344 = vmatpush1.xpose.msra.mxu0 0.0
    %345 = vmatprep.subr.mxu0 0.0
    %346 = vmatpush1.xpose.msra.mxu0 0.0
    %347 = vmatprep.subr.mxu0 0.0
    %348 = vmatpush1.xpose.msra.mxu0 0.0
    %349 = vmatprep.subr.mxu0 0.0
    %350 = vmatpush1.xpose.msra.mxu0 0.0
    %351 = vmatprep.subr.mxu0 0.0
    %352 = vmatpush1.xpose.msra.mxu0 0.0
    %353 = vmatprep.subr.mxu0 0.0
    %354 = vmatpush1.xpose.msra.mxu0 0.0
    %355 = vmatprep.subr.mxu0 0.0
    %356 = vmatpush1.xpose.msra.mxu0 0.0
    %357 = vmatprep.subr.mxu0 0.0
    %358 = vmatpush1.xpose.msra.mxu0 0.0
    %359 = vmatprep.subr.mxu0 0.0
    %360 = vmatpush1.xpose.msra.mxu0 0.0
    %361 = vmatprep.subr.mxu0 0.0
    %362 = vmatpush1.xpose.msra.mxu0 0.0
    %363 = vmatprep.subr.mxu0 0.0
    %v364 = vand.u32 %v99, 4294901760
    %365 = vmatpush1.xpose.msra.mxu0 %v364
    %366 = vmatprep.subr.mxu0 0.0
    %v367 = vand.u32 %v96, 4294901760
    %368 = vmatpush1.xpose.msra.mxu0 %v367
    %369 = vmatprep.subr.mxu0 0.0
    %370 = vmatpush2.xpose.msra.mxu0 0.0
    %371 = vmatprep.subr.mxu0 0.0
    %372 = vmatpush2.xpose.msra.mxu0 0.0
    %373 = vmatprep.subr.mxu0 0.0
    %374 = vmatpush2.xpose.msra.mxu0 0.0
    %375 = vmatprep.subr.mxu0 0.0
    %376 = vmatpush2.xpose.msra.mxu0 0.0
    %377 = vmatprep.subr.mxu0 0.0
    %378 = vmatpush2.xpose.msra.mxu0 0.0
    %379 = vmatprep.subr.mxu0 0.0
    %380 = vmatpush2.xpose.msra.mxu0 0.0
    %381 = vmatprep.subr.mxu0 0.0
    %382 = vmatpush2.xpose.msra.mxu0 0.0
    %383 = vmatprep.subr.mxu0 0.0
    %384 = vmatpush2.xpose.msra.mxu0 0.0
    %385 = vmatprep.subr.mxu0 0.0
    %386 = vmatpush2.xpose.msra.mxu0 0.0
    %387 = vmatprep.subr.mxu0 0.0
    %388 = vmatpush2.xpose.msra.mxu0 0.0
    %389 = vmatprep.subr.mxu0 0.0
    %390 = vmatpush2.xpose.msra.mxu0 0.0
    %391 = vmatprep.subr.mxu0 0.0
    %392 = vmatpush2.xpose.msra.mxu0 0.0
    %393 = vmatprep.subr.mxu0 0.0
    %394 = vmatpush2.xpose.msra.mxu0 0.0
    %395 = vmatprep.subr.mxu0 0.0
    %396 = vmatpush2.xpose.msra.mxu0 0.0
    %397 = vmatprep.subr.mxu0 0.0
    %398 = vmatpush2.xpose.msra.mxu0 0.0
    %399 = vmatprep.subr.mxu0 0.0
    %400 = vmatpush2.xpose.msra.mxu0 0.0
    %401 = vmatprep.mubr.f32.mxu0 0.0
    %v402 = vand.u32 %v93, 4294901760
    %v403 = vsub.f32 %v93, %v402
    %v404 = vand.u32 %v403, 4294901760
    %405 = vmatmul.mubr.f32.gmra.mxu0 %v404
    %v406 = vpop.f32.mrf.mxu0
    %v407 = vadd.f32 %v332, %v406
    %v408 = vpop.f32.mrf.mxu0
    %409 = vdwg.mxu0
    %410 = vmatprep.subr.mxu0 0.0
    %411 = vmatpush1.xpose.msra.mxu0 0.0
    %412 = vmatprep.subr.mxu0 0.0
    %413 = vmatpush1.xpose.msra.mxu0 0.0
    %414 = vmatprep.subr.mxu0 0.0
    %415 = vmatpush1.xpose.msra.mxu0 0.0
    %416 = vmatprep.subr.mxu0 0.0
    %417 = vmatpush1.xpose.msra.mxu0 0.0
    %418 = vmatprep.subr.mxu0 0.0
    %419 = vmatpush1.xpose.msra.mxu0 0.0
    %420 = vmatprep.subr.mxu0 0.0
    %421 = vmatpush1.xpose.msra.mxu0 0.0
    %422 = vmatprep.subr.mxu0 0.0
    %423 = vmatpush1.xpose.msra.mxu0 0.0
    %424 = vmatprep.subr.mxu0 0.0
    %425 = vmatpush1.xpose.msra.mxu0 0.0
    %426 = vmatprep.subr.mxu0 0.0
    %427 = vmatpush1.xpose.msra.mxu0 0.0
    %428 = vmatprep.subr.mxu0 0.0
    %429 = vmatpush1.xpose.msra.mxu0 0.0
    %430 = vmatprep.subr.mxu0 0.0
    %431 = vmatpush1.xpose.msra.mxu0 0.0
    %432 = vmatprep.subr.mxu0 0.0
    %433 = vmatpush1.xpose.msra.mxu0 0.0
    %434 = vmatprep.subr.mxu0 0.0
    %435 = vmatpush1.xpose.msra.mxu0 0.0
    %436 = vmatprep.subr.mxu0 0.0
    %437 = vmatpush1.xpose.msra.mxu0 0.0
    %438 = vmatprep.subr.mxu0 0.0
    %v439 = vand.u32 %v99, 4294901760
    %v440 = vsub.f32 %v99, %v439
    %v441 = vand.u32 %v440, 4294901760
    %442 = vmatpush1.xpose.msra.mxu0 %v441
    %443 = vmatprep.subr.mxu0 0.0
    %v444 = vand.u32 %v96, 4294901760
    %v445 = vsub.f32 %v96, %v444
    %v446 = vand.u32 %v445, 4294901760
    %447 = vmatpush1.xpose.msra.mxu0 %v446
    %448 = vmatprep.subr.mxu0 0.0
    %449 = vmatpush2.xpose.msra.mxu0 0.0
    %450 = vmatprep.subr.mxu0 0.0
    %451 = vmatpush2.xpose.msra.mxu0 0.0
    %452 = vmatprep.subr.mxu0 0.0
    %453 = vmatpush2.xpose.msra.mxu0 0.0
    %454 = vmatprep.subr.mxu0 0.0
    %455 = vmatpush2.xpose.msra.mxu0 0.0
    %456 = vmatprep.subr.mxu0 0.0
    %457 = vmatpush2.xpose.msra.mxu0 0.0
    %458 = vmatprep.subr.mxu0 0.0
    %459 = vmatpush2.xpose.msra.mxu0 0.0
    %460 = vmatprep.subr.mxu0 0.0
    %461 = vmatpush2.xpose.msra.mxu0 0.0
    %462 = vmatprep.subr.mxu0 0.0
    %463 = vmatpush2.xpose.msra.mxu0 0.0
    %464 = vmatprep.subr.mxu0 0.0
    %465 = vmatpush2.xpose.msra.mxu0 0.0
    %466 = vmatprep.subr.mxu0 0.0
    %467 = vmatpush2.xpose.msra.mxu0 0.0
    %468 = vmatprep.subr.mxu0 0.0
    %469 = vmatpush2.xpose.msra.mxu0 0.0
    %470 = vmatprep.subr.mxu0 0.0
    %471 = vmatpush2.xpose.msra.mxu0 0.0
    %472 = vmatprep.subr.mxu0 0.0
    %473 = vmatpush2.xpose.msra.mxu0 0.0
    %474 = vmatprep.subr.mxu0 0.0
    %475 = vmatpush2.xpose.msra.mxu0 0.0
    %476 = vmatprep.subr.mxu0 0.0
    %477 = vmatpush2.xpose.msra.mxu0 0.0
    %478 = vmatprep.subr.mxu0 0.0
    %479 = vmatpush2.xpose.msra.mxu0 0.0
    %480 = vmatprep.mubr.f32.mxu0 0.0
    %v481 = vand.u32 %v93, 4294901760
    %482 = vmatmul.mubr.f32.gmra.mxu0 %v481
    %v483 = vpop.f32.mrf.mxu0
    %v484 = vadd.f32 %v407, %v483
    %v485 = vpop.f32.mrf.mxu0
    %486 = vdwg.mxu0
    %487 = vmatprep.subr.mxu0 0.0
    %488 = vmatpush1.xpose.msra.mxu0 0.0
    %489 = vmatprep.subr.mxu0 0.0
    %490 = vmatpush1.xpose.msra.mxu0 0.0
    %491 = vmatprep.subr.mxu0 0.0
    %492 = vmatpush1.xpose.msra.mxu0 0.0
    %493 = vmatprep.subr.mxu0 0.0
    %494 = vmatpush1.xpose.msra.mxu0 0.0
    %495 = vmatprep.subr.mxu0 0.0
    %496 = vmatpush1.xpose.msra.mxu0 0.0
    %497 = vmatprep.subr.mxu0 0.0
    %498 = vmatpush1.xpose.msra.mxu0 0.0
    %499 = vmatprep.subr.mxu0 0.0
    %500 = vmatpush1.xpose.msra.mxu0 0.0
    %501 = vmatprep.subr.mxu0 0.0
    %502 = vmatpush1.xpose.msra.mxu0 0.0
    %503 = vmatprep.subr.mxu0 0.0
    %504 = vmatpush1.xpose.msra.mxu0 0.0
    %505 = vmatprep.subr.mxu0 0.0
    %506 = vmatpush1.xpose.msra.mxu0 0.0
    %507 = vmatprep.subr.mxu0 0.0
    %508 = vmatpush1.xpose.msra.mxu0 0.0
    %509 = vmatprep.subr.mxu0 0.0
    %510 = vmatpush1.xpose.msra.mxu0 0.0
    %511 = vmatprep.subr.mxu0 0.0
    %512 = vmatpush1.xpose.msra.mxu0 0.0
    %513 = vmatprep.subr.mxu0 0.0
    %514 = vmatpush1.xpose.msra.mxu0 0.0
    %515 = vmatprep.subr.mxu0 0.0
    %v516 = vand.u32 %v99, 4294901760
    %517 = vmatpush1.xpose.msra.mxu0 %v516
    %518 = vmatprep.subr.mxu0 0.0
    %v519 = vand.u32 %v96, 4294901760
    %520 = vmatpush1.xpose.msra.mxu0 %v519
    %521 = vmatprep.subr.mxu0 0.0
    %522 = vmatpush2.xpose.msra.mxu0 0.0
    %523 = vmatprep.subr.mxu0 0.0
    %524 = vmatpush2.xpose.msra.mxu0 0.0
    %525 = vmatprep.subr.mxu0 0.0
    %526 = vmatpush2.xpose.msra.mxu0 0.0
    %527 = vmatprep.subr.mxu0 0.0
    %528 = vmatpush2.xpose.msra.mxu0 0.0
    %529 = vmatprep.subr.mxu0 0.0
    %530 = vmatpush2.xpose.msra.mxu0 0.0
    %531 = vmatprep.subr.mxu0 0.0
    %532 = vmatpush2.xpose.msra.mxu0 0.0
    %533 = vmatprep.subr.mxu0 0.0
    %534 = vmatpush2.xpose.msra.mxu0 0.0
    %535 = vmatprep.subr.mxu0 0.0
    %536 = vmatpush2.xpose.msra.mxu0 0.0
    %537 = vmatprep.subr.mxu0 0.0
    %538 = vmatpush2.xpose.msra.mxu0 0.0
    %539 = vmatprep.subr.mxu0 0.0
    %540 = vmatpush2.xpose.msra.mxu0 0.0
    %541 = vmatprep.subr.mxu0 0.0
    %542 = vmatpush2.xpose.msra.mxu0 0.0
    %543 = vmatprep.subr.mxu0 0.0
    %544 = vmatpush2.xpose.msra.mxu0 0.0
    %545 = vmatprep.subr.mxu0 0.0
    %546 = vmatpush2.xpose.msra.mxu0 0.0
    %547 = vmatprep.subr.mxu0 0.0
    %548 = vmatpush2.xpose.msra.mxu0 0.0
    %549 = vmatprep.subr.mxu0 0.0
    %550 = vmatpush2.xpose.msra.mxu0 0.0
    %551 = vmatprep.subr.mxu0 0.0
    %552 = vmatpush2.xpose.msra.mxu0 0.0
    %553 = vmatprep.mubr.f32.mxu0 0.0
    %v554 = vand.u32 %v93, 4294901760
    %555 = vmatmul.mubr.f32.gmra.mxu0 %v554
    %v556 = vpop.f32.mrf.mxu0
    %v557 = vadd.f32 %v484, %v556
    %v558 = vpop.f32.mrf.mxu0
    %559 = vdwg.mxu0
    %v560 = vadd.f32 %v91, %v557
    %vm561 = vcmask 122880
    %562 = vst.msk [vmem:[#allocation4] sm:$0x1] %vm561, %v560
    %v563 = vld [vmem:[#allocation3] sm:$0xff]
    %v564 = vld [vmem:[#allocation3 + $0x8] sm:$0xff]
    %v565 = vsel %vm37, %v89, 0.0
    %566 = vadd.xlane.f32.xlu0 %v565
    %v567 = vpop.xlane.xlu0 %566
    %v568 = vsel %vm37, %v90, 0.0
    %569 = vadd.xlane.f32.xlu0 %v568
    %v570 = vpop.xlane.xlu0 %569
    %v571 = vadd.f32 %v563, %v567
    %v572 = vadd.f32 %v564, %v570
    %vm573 = vcmask 7168
    %574 = vst.msk [vmem:[#allocation3] sm:$0xff] %vm573, %v571
    %575 = vst.msk [vmem:[#allocation3 + $0x8] sm:$0xff] %vm573, %v572
    // Predicated region
    $region18: #{tpu_custom_call.1} parent=1 // pred_check
      %p576 = pneg %p16
    $region19: #{tpu_custom_call.1} parent=1 // pred_check_branch
      %578 = sbr.rel (%p576) target = $region21
    $region20: #{tpu_custom_call.1} parent=1 // pred_region
      %v579 = vld [vmem:[#allocation2] sm:$0xff]
      %v580 = vld [vmem:[#allocation2 + $0x8] sm:$0xff]
      %v581 = vld [vmem:[#allocation3] sm:$0xff]
      %v582 = vld [vmem:[#allocation3 + $0x8] sm:$0xff]
      %v583 = vmax.f32 %v581, 1e-16
      %v584 = vmax.f32 %v582, 1e-16
      %v585 = vrsqrt.pop %v583
      %v586 = vmul.f32 %v583, %v585
      %vm587 = vcmp.eq.f32.partialorder %v583, inf
      %v588 = vsel %vm587, %v583, %v586
      %vm589 = vcmp.eq.f32.partialorder %v583, 0.0
      %v590 = vand.u32 %v583, 2147483648
      %v591 = vsel %vm589, %v590, %v588
      %v592 = vrsqrt.pop %v584
      %v593 = vmul.f32 %v584, %v592
      %vm594 = vcmp.eq.f32.partialorder %v584, inf
      %v595 = vsel %vm594, %v584, %v593
      %vm596 = vcmp.eq.f32.partialorder %v584, 0.0
      %v597 = vand.u32 %v584, 2147483648
      %v598 = vsel %vm596, %v597, %v595
      %v599 = vrcp.pop %v591
      %v600 = vmul.f32 1.0, %v599
      %v601 = vrcp.pop %v598
      %v602 = vmul.f32 1.0, %v601
      %v603 = vld [vmem:[#allocation4] sm:$0x1]
      %v604 = vmax.f32 %v603, 1e-16
      %v605 = vrsqrt.pop %v604
      %v606 = vmul.f32 %v604, %v605
      %vm607 = vcmp.eq.f32.partialorder %v604, inf
      %v608 = vsel %vm607, %v604, %v606
      %vm609 = vcmp.eq.f32.partialorder %v604, 0.0
      %v610 = vand.u32 %v604, 2147483648
      %v611 = vsel %vm609, %v610, %v608
      %v612 = vrcp.pop %v611
      %v613 = vmul.f32 1.0, %v612
      %v614 = vmul.f32 %v600, 2.0
      %v615 = vmul.f32 %v602, 2.0
      %617 = vset.pattern.permute.xlu0 0
      %618 = vperm.xlu0 %617, %v614
      %v619 = vpop.permute.xlu0 %618
      %622 = vset.pattern.permute.xlu0 0
      %623 = vperm.xlu0 %622, %v615
      %v624 = vpop.permute.xlu0 %623
      %v626 = vmul.f32 %v579, %v619
      %v627 = vmul.f32 %v580, %v624
      %v629 = vlaneseq
      %v630 = vshrl.u32 %v629, 7
      %v631 = vsub.s32 0, %v630
      %v632 = vrot.slane %v613, %v631
      %v634 = vmul.f32 %v626, %v632
      %v635 = vmul.f32 %v627, %v632
      %v636 = vlaneseq
      %v637 = vand.u32 %v636, 127
      %v638 = vlaneseq
      %v639 = vshrl.u32 %v638, 7
      %v640 = vadd.s32 %v639, 8
      %s641 = smul.u32 0, 16
      %v642 = vstv %s641
      %v643 = vadd.s32 %v639, %v642
      %v644 = vadd.s32 %v640, %v642
      %vm645 = vcmp.eq.s32.totalorder %v637, %v643
      %vm646 = vcmp.eq.s32.totalorder %v637, %v644
      %v647 = vsel %vm645, -inf, %v634
      %v648 = vsel %vm646, -inf, %v635
      %v649 = vsel %vm84, %v647, -inf
      %650 = vmax.xlane.f32.xlu0 %v649
      %v651 = vpop.xlane.xlu0 %650
      %v652 = vsel %vm84, %v648, -inf
      %653 = vmax.xlane.f32.xlu0 %v652
      %v654 = vpop.xlane.xlu0 %653
      %v655 = vsub.f32 %v647, %v651
      %v656 = vsub.f32 %v648, %v654
      %v657 = vmul.f32 %v655, 1.442695
      %v658 = vpow.pop %v657
      %v659 = vmul.f32 %v656, 1.442695
      %v660 = vpow.pop %v659
      %v661 = vsel %vm84, %v658, 0.0
      %662 = vadd.xlane.f32.xlu0 %v661
      %v663 = vpop.xlane.xlu0 %662
      %v664 = vsel %vm84, %v660, 0.0
      %665 = vadd.xlane.f32.xlu0 %v664
      %v666 = vpop.xlane.xlu0 %665
      %v667 = vlog2.pop %v663
      %v668 = vmul.f32 %v667, 0.6931472
      %v669 = vlog2.pop %v666
      %v670 = vmul.f32 %v669, 0.6931472
      %v671 = vadd.f32 %v668, %v651
      %v672 = vadd.f32 %v670, %v654
      %v673 = vld [vmem:[%s1] sm:$0xff]
      %v674 = vld [vmem:[%s1 + $0x8] sm:$0xff]
      %v675 = vld [vmem:[%s2] sm:$0x1]
      %676 = vset.pattern.permute.xlu0 0
      %677 = vperm.xlu0 %676, %v673
      %v678 = vpop.permute.xlu0 %677
      %679 = vset.pattern.permute.xlu0 0
      %680 = vperm.xlu0 %679, %v674
      %v681 = vpop.permute.xlu0 %680
      %v682 = vlaneseq
      %v683 = vshrl.u32 %v682, 7
      %v684 = vsub.s32 0, %v683
      %v685 = vrot.slane %v675, %v684
      %vm686 = vcmp.eq.s32.totalorder %v678, %v685
      %vm687 = vcmp.eq.s32.totalorder %v681, %v685
      %vm688 = vmxor %vm645, 1
      %vm689 = vmxor %vm646, 1
      %vm690 = vmand %vm686, %vm688
      %vm691 = vmand %vm687, %vm689
      %v692 = vsel %vm690, 1, 0
      %v693 = vsel %vm691, 1, 0
      %v694 = vcvt.s32.f32 %v692
      %v695 = vcvt.s32.f32 %v693
      %v696 = vsel %vm84, %v694, 0.0
      %697 = vadd.xlane.f32.xlu0 %v696
      %v698 = vpop.xlane.xlu0 %697
      %v699 = vsel %vm84, %v695, 0.0
      %700 = vadd.xlane.f32.xlu0 %v699
      %v701 = vpop.xlane.xlu0 %700
      %v702 = vmul.f32 %v694, %v634
      %v703 = vmul.f32 %v695, %v635
      %v704 = vsel %vm84, %v702, 0.0
      %705 = vadd.xlane.f32.xlu0 %v704
      %v706 = vpop.xlane.xlu0 %705
      %v707 = vsel %vm84, %v703, 0.0
      %708 = vadd.xlane.f32.xlu0 %v707
      %v709 = vpop.xlane.xlu0 %708
      %v710 = vmul.f32 %v671, %v698
      %v711 = vmul.f32 %v672, %v701
      %v712 = vsub.f32 %v710, %v706
      %v713 = vsub.f32 %v711, %v709
      %v714 = vrcp.pop %v698
      %v715 = vmul.f32 %v712, %v714
      %v716 = vrcp.pop %v701
      %v717 = vmul.f32 %v713, %v716
      %v718 = vsel %vm573, %v715, 0.0
      %v719 = vsel %vm573, %v717, 0.0
      %v720 = vadd.f32 %v718, %v719
      %721 = vadd.xlane.f32.xlu0 %v720
      %v722 = vpop.xlane.xlu0 %721
      %v723 = vrot.slane %v722, 4
      %v724 = vadd.f32 %v722, %v723
      %v725 = vrot.slane %v724, 2
      %v726 = vadd.f32 %v724, %v725
      %v727 = vrot.slane %v726, 1
      %v728 = vadd.f32 %v726, %v727
      %s729 = vtos %v728
      %v730 = vstv %s729
      %v731 = vadd.f32 %v730, 0.0
      %732 = vst [vmem:[#allocation5] sm:$0xff] %v731
    $region21: #{tpu_custom_call.1} parent=1 // pred_fallthru
      _
    // Predicated region
    $region22: #{tpu_custom_call.1} parent=1 // pred_check
      _
    $region23: #{tpu_custom_call.1} parent=1 // pred_check_branch
      %734 = sbr.rel (0) target = $region25
    $region24: #{tpu_custom_call.1} parent=1 // pred_region
      %s736 = ssub.s32 128, 128
      %737 = vsyncadd [#allocation6], %s736
      %s739 = sshll.u32 [#allocation5], 4
      %s740 = int_to_ptr.vmem [resolvable:$true] %s739
      %742 = dma.vmem_to_hbm [thread:$0]  %s740, 128, %s3, [#allocation6]
    $region25: #{tpu_custom_call.1} parent=1 // pred_fallthru
      _
    // Predicated region
    $region26: #{tpu_custom_call.1} parent=1 // pred_check
      _
    $region27: #{tpu_custom_call.1} parent=1 // pred_check_branch
      %744 = sbr.rel (0) target = $region29
    $region28: #{tpu_custom_call.1} parent=1 // pred_region
      %745 = dma.done [#allocation6], 128
    $region29: #{tpu_custom_call.1} parent=1 // pred_fallthru
      _
    %746 = vsyncpa [#allocation6], 1

</llo_original>
